<compile_context>
chip_gen: v7x
topology: tpu7x:2x2x1
jax: 0.10.0
libtpu: 0.0.40
codegen_flags: <defaults>
</compile_context>

<pallas_src>
import math

import jax
import jax.numpy as jnp
import numpy as np
from jax import lax
from jax.experimental import pallas as pl
from jax.experimental.pallas import tpu as pltpu


def _vmem_budgets():
    """Generation-aware scoped-VMEM limit and per-step row-tile byte budget."""
    cap = 64 * 1024 * 1024
    try:
        info = pltpu.get_tpu_info()
        cap = int(getattr(info, "vmem_capacity_bytes", cap))
    except Exception:
        pass
    # 64 MiB on v5e/v6e (128 MiB physical), ~38 MiB on v7x (64 MiB physical).
    limit = max(16 * 1024 * 1024, min((cap * 3) // 5, 64 * 1024 * 1024))
    budget = max(2 * 1024 * 1024, limit // 3)
    return limit, budget


_VMEM_LIMIT, _TILE_BUDGET = _vmem_budgets()


def _pick_row_tile(H, row_bytes, budget_bytes, even=False):
    """Largest divisor of H whose per-row working set fits the byte budget.

    `row_bytes` must already include pipelining (double-buffer) factors and
    in-kernel temporaries.  Falls back to the smallest legal tile (never H)
    so an over-tight budget degrades throughput, not VMEM safety.
    """
    max_rows = max(1, int(budget_bytes) // max(int(row_bytes), 1))
    for th in range(min(H, max_rows), 0, -1):
        if H % th:
            continue
        if even and th % 2:
            continue
        return th
    return 2 if (even and H % 2 == 0) else 1


# --------------- lateral 1x1 conv (+ fused top-down merge) kernels ---------- #

def _lateral_kernel(x_ref, w_ref, b_ref, o_ref):
    # x_ref: (1, TH, W, Cin)  w_ref: (Cin, Cout)  b_ref: (1, Cout)
    _, TH, W, Cout = o_ref.shape
    Cin = x_ref.shape[3]
    x = x_ref[...].reshape(TH * W, Cin).astype(w_ref.dtype)
    y = jnp.dot(x, w_ref[...], preferred_element_type=jnp.float32)
    y = y + b_ref[...].astype(jnp.float32)
    o_ref[...] = y.reshape(1, TH, W, Cout).astype(o_ref.dtype)


def _lateral_merge_kernel(x_ref, up_ref, w_ref, b_ref, o_ref):
    # Fused: lateral 1x1 conv + nearest-2x upsample of the coarser merged level.
    # x_ref: (1, TH, W, Cin)  up_ref: (1, TH//2, W//2, Cout)
    _, TH, W, Cout = o_ref.shape
    Cin = x_ref.shape[3]
    x = x_ref[...].reshape(TH * W, Cin).astype(w_ref.dtype)
    lat = jnp.dot(x, w_ref[...], preferred_element_type=jnp.float32)
    lat = (lat + b_ref[...].astype(jnp.float32)).reshape(1, TH, W, Cout)
    s = up_ref[...].astype(jnp.float32)                      # (1, TH//2, W//2, Cout)
    th2, w2 = s.shape[1], s.shape[2]
    up = jnp.broadcast_to(s[:, :, None, :, None, :],
                          (1, th2, 2, w2, 2, Cout)).reshape(1, TH, W, Cout)
    o_ref[...] = (lat + up).astype(o_ref.dtype)


def lateral_conv(x, w, b, out_dtype, *, tile_budget=_TILE_BUDGET,
                 vmem_limit=_VMEM_LIMIT):
    """Lateral 1x1 conv (top pyramid level).  x: (N,H,W,Cin) -> (N,H,W,Cout)."""
    N, H, W, Cin = x.shape
    Cout = w.shape[1]
    xi = x.dtype.itemsize
    oi = jnp.dtype(out_dtype).itemsize
    # 2x for double-buffered in/out, +4*Cout for the f32 accumulator temp.
    row_bytes = W * (2 * Cin * xi + Cout * (2 * oi + 4))
    th = _pick_row_tile(H, row_bytes, tile_budget)
    flops = 2 * N * H * W * Cin * Cout
    bytes_accessed = (x.size * xi + N * H * W * Cout * oi
                      + w.size * w.dtype.itemsize + Cout * 4)
    return pl.pallas_call(
        _lateral_kernel,
        out_shape=jax.ShapeDtypeStruct((N, H, W, Cout), out_dtype),
        grid=(N, H // th),
        in_specs=[
            pl.BlockSpec((1, th, W, Cin), lambda n, t: (n, t, 0, 0)),
            pl.BlockSpec((Cin, Cout), lambda n, t: (0, 0)),
            pl.BlockSpec((1, Cout), lambda n, t: (0, 0)),
        ],
        out_specs=pl.BlockSpec((1, th, W, Cout), lambda n, t: (n, t, 0, 0)),
        compiler_params=pltpu.CompilerParams(
            dimension_semantics=("parallel", "parallel"),
            vmem_limit_bytes=vmem_limit),
        cost_estimate=pl.CostEstimate(flops=flops, transcendentals=0,
                                      bytes_accessed=bytes_accessed),
    )(x, w, b.reshape(1, Cout))


def lateral_merge(x, up_small, w, b, out_dtype, *, tile_budget=_TILE_BUDGET,
                  vmem_limit=_VMEM_LIMIT):
    """Fused lateral 1x1 conv + (coarser merged level nearest-upsampled 2x) add."""
    N, H, W, Cin = x.shape
    Cout = w.shape[1]
    assert H % 2 == 0 and W % 2 == 0 and up_small.shape == (N, H // 2, W // 2, Cout), \
        "nearest-2x top-down merge requires an exact 2x pyramid (as in the PyTorch module)"
    xi = x.dtype.itemsize
    oi = jnp.dtype(out_dtype).itemsize
    ui = up_small.dtype.itemsize
    row_bytes = (W * (2 * Cin * xi + Cout * (2 * oi + 8))
                 + (W // 2) * Cout * ui)
    th = _pick_row_tile(H, row_bytes, tile_budget, even=True)
    flops = 2 * N * H * W * Cin * Cout + N * H * W * Cout
    bytes_accessed = (x.size * xi + up_small.size * ui + N * H * W * Cout * oi
                      + w.size * w.dtype.itemsize + Cout * 4)
    return pl.pallas_call(
        _lateral_merge_kernel,
        out_shape=jax.ShapeDtypeStruct((N, H, W, Cout), out_dtype),
        grid=(N, H // th),
        in_specs=[
            pl.BlockSpec((1, th, W, Cin), lambda n, t: (n, t, 0, 0)),
            pl.BlockSpec((1, th // 2, W // 2, Cout), lambda n, t: (n, t, 0, 0)),
            pl.BlockSpec((Cin, Cout), lambda n, t: (0, 0)),
            pl.BlockSpec((1, Cout), lambda n, t: (0, 0)),
        ],
        out_specs=pl.BlockSpec((1, th, W, Cout), lambda n, t: (n, t, 0, 0)),
        compiler_params=pltpu.CompilerParams(
            dimension_semantics=("parallel", "parallel"),
            vmem_limit_bytes=vmem_limit),
        cost_estimate=pl.CostEstimate(flops=flops, transcendentals=0,
                                      bytes_accessed=bytes_accessed),
    )(x, up_small, w, b.reshape(1, Cout))


# --------------------------- 3x3 fpn conv kernel ---------------------------- #

def _conv3x3_kernel(x_ref, top_ref, bot_ref, w_ref, b_ref, o_ref):
    # x_ref:   (1, TH, W, Cin)   center rows of this tile
    # top_ref: (1, 1,  W, Cin)   row above the tile (clamped; zeroed when t == 0)
    # bot_ref: (1, 1,  W, Cin)   row below the tile (clamped; zeroed when last)
    # w_ref:   (3, 3*Cin, Cout)  per-kh weights, 3 kw taps folded into K
    # b_ref:   (1, Cout)         o_ref: (1, TH, W, Cout)
    t = pl.program_id(1)
    nt = pl.num_programs(1)
    _, TH, W, Cout = o_ref.shape
    Cin = x_ref.shape[3]
    cdt = w_ref.dtype

    x = x_ref[0].astype(cdt)                                          # (TH, W, Cin)
    top = jnp.where(t > 0, top_ref[0], jnp.zeros_like(top_ref[0])).astype(cdt)
    bot = jnp.where(t < nt - 1, bot_ref[0], jnp.zeros_like(bot_ref[0])).astype(cdt)
    rows = jnp.concatenate([top, x, bot], axis=0)                     # (TH+2, W, Cin)
    zcol = jnp.zeros((TH + 2, 1, Cin), cdt)
    slab = jnp.concatenate([zcol, rows, zcol], axis=1)                # (TH+2, W+2, Cin)

    acc = None
    for kh in range(3):
        # Fold the 3 kw taps along the contraction axis: one (TH*W, 3*Cin) LHS
        # per kh -> 3 matmuls with K=3*Cin and 3 accumulator adds (vs 9 + 9).
        lhs = jnp.concatenate(
            [slab[kh:kh + TH, kw:kw + W, :] for kw in range(3)], axis=-1
        ).reshape(TH * W, 3 * Cin)
        part = jnp.dot(lhs, w_ref[kh], preferred_element_type=jnp.float32)
        acc = part if acc is None else acc + part
    y = acc + b_ref[...].astype(jnp.float32)
    o_ref[...] = y.reshape(1, TH, W, Cout).astype(o_ref.dtype)


def conv3x3_same(x, w3, b, out_dtype, *, tile_budget=_TILE_BUDGET,
                 vmem_limit=_VMEM_LIMIT):
    """3x3 conv, stride 1, padding 1.  x: (N,H,W,Cin) -> (N,H,W,Cout).

    No HBM pre-pad and no manual DMA: the 1-row halos arrive as two extra
    auto-pipelined 1-row blocks (clamped index_maps, zeroed at image borders),
    and the 1-column pad is materialized once per tile in VMEM.
    """
    N, H, W, Cin = x.shape
    Cout = w3.shape[-1]
    assert w3.shape == (3, 3 * Cin, Cout)
    xi = x.dtype.itemsize
    oi = jnp.dtype(out_dtype).itemsize
    # 2x double-buffered input + padded slab + im2col LHS ~= 6*Cin per row;
    # f32 accumulator + double-buffered output ~= (8 + 2*oi)*Cout per row.
    row_bytes = W * (6 * Cin * xi + Cout * (2 * oi + 8))
    th = _pick_row_tile(H, row_bytes, tile_budget)
    flops = 2 * N * H * W * 9 * Cin * Cout
    bytes_accessed = (x.size * xi + 2 * N * (H // th) * W * Cin * xi
                      + N * H * W * Cout * oi
                      + w3.size * w3.dtype.itemsize + Cout * 4)
    return pl.pallas_call(
        _conv3x3_kernel,
        out_shape=jax.ShapeDtypeStruct((N, H, W, Cout), out_dtype),
        grid=(N, H // th),
        in_specs=[
            pl.BlockSpec((1, th, W, Cin), lambda n, t: (n, t, 0, 0)),
            # 1-row halo blocks: row-block size 1 => block index == row index.
            pl.BlockSpec((1, 1, W, Cin),
                         lambda n, t: (n, jnp.maximum(t * th - 1, 0), 0, 0)),
            pl.BlockSpec((1, 1, W, Cin),
                         lambda n, t: (n, jnp.minimum(t * th + th, H - 1), 0, 0)),
            pl.BlockSpec((3, 3 * Cin, Cout), lambda n, t: (0, 0, 0)),
            pl.BlockSpec((1, Cout), lambda n, t: (0, 0)),
        ],
        out_specs=pl.BlockSpec((1, th, W, Cout), lambda n, t: (n, t, 0, 0)),
        compiler_params=pltpu.CompilerParams(
            dimension_semantics=("parallel", "parallel"),
            vmem_limit_bytes=vmem_limit),
        cost_estimate=pl.CostEstimate(flops=flops, transcendentals=0,
                                      bytes_accessed=bytes_accessed),
    )(x, x, x, w3, b.reshape(1, Cout))


# -------------------------------- FPN module -------------------------------- #

def _uniform(key, shape, scale, dtype):
    return jax.random.uniform(key, shape, jnp.float32, -scale, scale).astype(dtype)


class FPNPallas:
    """FPN forward (defaults: start_level=0, end_level=-1, add_extra_convs=False)."""

    def __init__(self, in_channels, out_channels, num_outs, key,
                 compute_dtype=jnp.bfloat16):
        assert isinstance(in_channels, (list, tuple))
        self.in_channels = list(in_channels)
        self.out_channels = out_channels
        self.num_ins = len(in_channels)
        self.num_outs = num_outs
        assert num_outs >= self.num_ins
        # compute_dtype feeds the MXU and the stored merged intermediates
        # (accumulation and final FPN outputs are always f32).  bf16 default:
        # ~2x HBM traffic and much higher MXU throughput on v5e/v6e/v7x.
        self.compute_dtype = jnp.dtype(compute_dtype)
        self.vmem_limit = _VMEM_LIMIT
        self.tile_budget = _TILE_BUDGET

        keys = jax.random.split(key, 4 * self.num_ins)
        self.lat_w, self.lat_b, self.fpn_w, self.fpn_b = [], [], [], []
        for i, cin in enumerate(self.in_channels):
            k0, k1, k2, k3 = keys[4 * i:4 * i + 4]
            s1 = 1.0 / math.sqrt(cin)                 # Conv2d(cin, cout, 1) fan-in
            self.lat_w.append(_uniform(k0, (cin, out_channels), s1, self.compute_dtype))
            self.lat_b.append(_uniform(k1, (out_channels,), s1, jnp.float32))
            s3 = 1.0 / math.sqrt(out_channels * 9)    # Conv2d(cout, cout, 3) fan-in
            # 3x3 weights stored (3, 3*Cin, Cout): per kh row the 3 kw taps are
            # folded along the contraction axis (ordering kw=0,1,2).
            self.fpn_w.append(_uniform(k2, (3, 3 * out_channels, out_channels), s3,
                                       self.compute_dtype))
            self.fpn_b.append(_uniform(k3, (out_channels,), s3, jnp.float32))

    def __call__(self, inputs_nchw):
        assert len(inputs_nchw) == self.num_ins
        cdt = self.compute_dtype
        # NCHW -> NHWC + cast to compute dtype (one fused XLA pass per input).
        feats = [jnp.transpose(x, (0, 2, 3, 1)).astype(cdt) for x in inputs_nchw]

        # 1)+2) lateral 1x1 convs fused with the top-down nearest-2x merge,
        #       walked coarse -> fine so each level consumes the already-merged
        #       coarser level directly.
        merged = [None] * self.num_ins
        merged[-1] = lateral_conv(feats[-1], self.lat_w[-1], self.lat_b[-1], cdt,
                                  tile_budget=self.tile_budget,
                                  vmem_limit=self.vmem_limit)
        for i in range(self.num_ins - 2, -1, -1):
            merged[i] = lateral_merge(feats[i], merged[i + 1],
                                      self.lat_w[i], self.lat_b[i], cdt,
                                      tile_budget=self.tile_budget,
                                      vmem_limit=self.vmem_limit)

        # 3) 3x3 fpn convs (f32 outputs, matching the PyTorch module).
        outs = [conv3x3_same(merged[i], self.fpn_w[i], self.fpn_b[i], jnp.float32,
                             tile_budget=self.tile_budget,
                             vmem_limit=self.vmem_limit)
                for i in range(self.num_ins)]
        # TODO(synk): fuse the 3x3 conv into the lateral/merge kernels (1-row halo
        # recompute) to drop one full HBM read of each merged level.

        # 4) extra levels (add_extra_convs=False): max_pool2d(1, stride=2) is a
        #    pure stride-2 subsample -> plain strided slice.
        for _ in range(self.num_outs - self.num_ins):
            outs.append(outs[-1][:, ::2, ::2, :])
        # TODO(synk): add_extra_convs ('on_input'/'on_lateral'/'on_output') stride-2
        # 3x3 conv branch is not exercised by the default config and not implemented.

        # NHWC -> NCHW (glue) to match the PyTorch module's output convention.
        return tuple(jnp.transpose(o, (0, 3, 1, 2)) for o in outs)


# --------------------------- pure-JAX reference ------------------------------ #

def fpn_reference(fpn, inputs_nchw):
    feats = [jnp.transpose(x, (0, 2, 3, 1)).astype(jnp.float32) for x in inputs_nchw]
    dn = ('NHWC', 'HWIO', 'NHWC')
    lats = []
    for i, x in enumerate(feats):
        w = fpn.lat_w[i].astype(jnp.float32).reshape(1, 1, x.shape[-1], fpn.out_channels)
        y = lax.conv_general_dilated(x, w, (1, 1), 'VALID', dimension_numbers=dn,
                                     precision=lax.Precision.HIGHEST) + fpn.lat_b[i]
        lats.append(y)
    for i in range(len(lats) - 1, 0, -1):
        up = jnp.repeat(jnp.repeat(lats[i], 2, axis=1), 2, axis=2)
        lats[i - 1] = lats[i - 1] + up
    outs = []
    for i in range(len(lats)):
        w = fpn.fpn_w[i].astype(jnp.float32).reshape(3, 3, fpn.out_channels,
                                                     fpn.out_channels)
        y = lax.conv_general_dilated(lats[i], w, (1, 1), ((1, 1), (1, 1)),
                                     dimension_numbers=dn,
                                     precision=lax.Precision.HIGHEST) + fpn.fpn_b[i]
        outs.append(y)
    for _ in range(fpn.num_outs - len(feats)):
        outs.append(outs[-1][:, ::2, ::2, :])
    return tuple(jnp.transpose(o, (0, 3, 1, 2)) for o in outs)


# ----------------------------------- main ----------------------------------- #

if __name__ == "__main__":
    key = jax.random.PRNGKey(0)
    in_channels = [16, 32, 64, 128]
    out_channels = 128            # lane-dense output channels (multiple of 128)
    num_outs = 5
    batch = 2
    spatials = [16, 8, 4, 2]

    keys = jax.random.split(key, len(in_channels) + 1)
    inputs = [
        jax.random.normal(keys[i], (batch, in_channels[i], spatials[i], spatials[i]),
                          jnp.float32)
        for i in range(len(in_channels))
    ]

    # Default compute_dtype=bfloat16 (per perf review); the reference below is
    # f32 HIGHEST precision, so the tolerance is sized for bf16 inputs/weights.
    fpn = FPNPallas(in_channels, out_channels, num_outs, keys[-1])

    outs = fpn(inputs)
    jax.block_until_ready(outs)

    refs = fpn_reference(fpn, inputs)
    for o, r in zip(outs, refs):
        assert o.shape == r.shape, (o.shape, r.shape)
        np.testing.assert_allclose(np.asarray(o), np.asarray(r), rtol=4e-2, atol=4e-2)

    print("KERNEL_OK")
</pallas_src>

<mosaic_0001>
module attributes {stable_mosaic.version = 11 : i64} {
  func.func @_lateral_kernel(%arg0: i32, %arg1: i32, %arg2: memref<1x2x2x128xbf16, #tpu.memory_space<vmem>>, %arg3: memref<128x128xbf16, #tpu.memory_space<vmem>>, %arg4: memref<1x128xf32, #tpu.memory_space<vmem>>, %arg5: memref<1x2x2x128xbf16, #tpu.memory_space<vmem>>) attributes {dimension_semantics = [#tpu.dimension_semantics<parallel>, #tpu.dimension_semantics<parallel>], iteration_bounds = array<i64: 2, 1>, scalar_prefetch = 0 : i64, scratch_operands = 0 : i64, tpu.core_type = #tpu.core_type<tc>, window_params = [{transform_indices = @transform_0, window_bounds = array<i64: 1, 2, 2, 128>}, {pipeline_mode = #tpu.pipeline_mode<synchronous>, transform_indices = @transform_1, window_bounds = array<i64: 128, 128>}, {pipeline_mode = #tpu.pipeline_mode<synchronous>, transform_indices = @transform_2, window_bounds = array<i64: 1, 128>}, {transform_indices = @transform_3, window_bounds = array<i64: 1, 2, 2, 128>}]} {
    %c0 = arith.constant 0 : index
    %c0_0 = arith.constant 0 : index
    %c0_1 = arith.constant 0 : index
    %c0_2 = arith.constant 0 : index
    %0 = vector.load %arg2[%c0, %c0_0, %c0_1, %c0_2] : memref<1x2x2x128xbf16, #tpu.memory_space<vmem>>, vector<1x2x2x128xbf16>
    %1 = vector.shape_cast %0 : vector<1x2x2x128xbf16> to vector<4x128xbf16>
    %c0_3 = arith.constant 0 : index
    %c0_4 = arith.constant 0 : index
    %2 = vector.load %arg3[%c0_3, %c0_4] : memref<128x128xbf16, #tpu.memory_space<vmem>>, vector<128x128xbf16>
    %cst = arith.constant dense<0.000000e+00> : vector<4x128xf32>
    %3 = tpu.matmul %1, %2, %cst {dimension_numbers = #tpu.dot_dimension_numbers<[1], [0], [0], [1], [0, 0, 1, 1], [], []>} : vector<4x128xbf16>, vector<128x128xbf16>, vector<4x128xf32> -> vector<4x128xf32>
    %c0_5 = arith.constant 0 : index
    %c0_6 = arith.constant 0 : index
    %4 = vector.load %arg4[%c0_5, %c0_6] : memref<1x128xf32, #tpu.memory_space<vmem>>, vector<1x128xf32>
    %5 = vector.broadcast %4 : vector<1x128xf32> to vector<4x128xf32>
    %6 = arith.addf %3, %5 : vector<4x128xf32>
    %7 = vector.shape_cast %6 : vector<4x128xf32> to vector<1x2x2x128xf32>
    %8 = arith.truncf %7 : vector<1x2x2x128xf32> to vector<1x2x2x128xbf16>
    %c0_7 = arith.constant 0 : index
    %c0_8 = arith.constant 0 : index
    %c0_9 = arith.constant 0 : index
    %c0_10 = arith.constant 0 : index
    %9 = vector.load %arg5[%c0_7, %c0_8, %c0_9, %c0_10] : memref<1x2x2x128xbf16, #tpu.memory_space<vmem>>, vector<1x2x2x128xbf16>
    tpu.vector_store %arg5[%c0_7, %c0_8, %c0_9, %c0_10], %8 {strides = array<i32>} : memref<1x2x2x128xbf16, #tpu.memory_space<vmem>>, vector<1x2x2x128xbf16>,
    return
  }
  func.func @transform_0(%arg0: i32, %arg1: i32) -> (i32, i32, i32, i32) {
    %c0_i32 = arith.constant 0 : i32
    %c0_i32_0 = arith.constant 0 : i32
    %c0_i32_1 = arith.constant 0 : i32
    return %arg0, %arg1, %c0_i32, %c0_i32_0 : i32, i32, i32, i32
  }
  func.func @transform_1(%arg0: i32, %arg1: i32) -> (i32, i32) {
    %c0_i32 = arith.constant 0 : i32
    %c0_i32_0 = arith.constant 0 : i32
    %c0_i32_1 = arith.constant 0 : i32
    return %c0_i32, %c0_i32_0 : i32, i32
  }
  func.func @transform_2(%arg0: i32, %arg1: i32) -> (i32, i32) {
    %c0_i32 = arith.constant 0 : i32
    %c0_i32_0 = arith.constant 0 : i32
    %c0_i32_1 = arith.constant 0 : i32
    return %c0_i32, %c0_i32_0 : i32, i32
  }
  func.func @transform_3(%arg0: i32, %arg1: i32) -> (i32, i32, i32, i32) {
    %c0_i32 = arith.constant 0 : i32
    %c0_i32_0 = arith.constant 0 : i32
    %c0_i32_1 = arith.constant 0 : i32
    return %arg0, %arg1, %c0_i32, %c0_i32_0 : i32, i32, i32, i32
  }
}

</mosaic_0001>

<llo_original>
// kernel: tpu_custom_call.1
$region0: #{tpu_custom_call.1}
  #allocation0 [shape = 'u32[]', space=smem, size = 0x4, offset = 0x4, fixed_abs, tag = 'smem constant byte address 0x4 - core index']
  #allocation1 [shape = 'u32[144,128]{1,0:T(1,128)}', space=vmem, size = 0x12000, scoped, tag = 'internal scratch']
  %s0 = inlined_call_operand.hbm [shape: bf16[2,2,2,128], index: 0, kind: input, shape index: {}]
  %s1 = inlined_call_operand.hbm [shape: bf16[128,128], index: 1, kind: input, shape index: {}]
  %s2 = inlined_call_operand.vmem [shape: f32[1,128], index: 2, kind: input, shape index: {}]
  %s3 = inlined_call_operand.hbm [shape: bf16[2,2,2,128], index: 3, kind: output, shape index: {}]
  %s4 = sld [smem:[#allocation0]]
  $region53: #{tpu_custom_call.1} parent=0
    _
  %s6 = ssub.s32 1, %s4
  %s7 = scalar_select 0, %s6, %s4
  $region1: #{tpu_custom_call.1} parent=0
    #allocation2 [shape = 'u8[2048]{0}', space=vmem, size = 0x800, scoped, tag = 'input window, operand 0']
    #allocation3 [shape = 's32[2]{0}', space=sflag, size = 0x8, scoped, tag = 'scoped memory for tpu_custom_call.1']
    #allocation4 [shape = 's32[2]{0}', space=sflag, size = 0x8, scoped, tag = 'scoped memory for tpu_custom_call.1']
    #allocation5 [shape = 'u8[32768]{0}', space=vmem, size = 0x8000, scoped, tag = 'input window, operand 1, single buffered']
    #allocation6 [shape = 's32[1]{0}', space=sflag, size = 0x4, scoped, tag = 'scoped memory for tpu_custom_call.1']
    #allocation7 [shape = 'u8[2048]{0}', space=vmem, size = 0x800, scoped, tag = 'output window, operand 0']
    %8 = vsyncpa [#allocation3], 0
    %s9 = scalar_lea.sflag [#allocation3], 1
    %10 = vsyncpa %s9, 0
    %11 = vsyncpa [#allocation6], 0
    %12 = vsyncpa [#allocation4], 0
    %s13 = scalar_lea.sflag [#allocation4], 1
    %14 = vsyncpa %s13, 0
    loop: start=0, step=1, limit=4
    $region2: #{tpu_custom_call.1} parent=1 // loop_pre_header
      _
    $region3: #{tpu_custom_call.1} parent=1 // loop_header
      %s16 = sphi 0, %s20
      %p17 = scmp.ge.s32.totalorder %s16, 4
      %s23 = sphi 0, %s35
      %s24 = sphi 0, %s31
      %s25 = sphi 0, %s23
      %s26 = sphi 0, %s24
      %s27 = sphi 0, %s25
      %s28 = sphi 0, %s26
      %s40 = sphi 0, %s42
      %s43 = sphi 0, %s40
      %s44 = sphi 0, %s43
      %s60 = sphi 0, %s44
      %s64 = sphi 0, %s64
      %s66 = sphi 0, %s64
      %s67 = sphi 0, %s66
      %s81 = sphi 0, %s67
      %s85 = sphi 0, %s85
      %s87 = sphi 0, %s85
      %s88 = sphi 0, %s87
      %s102 = sphi 0, %s88
      %s110 = sphi 0, %s112
      %s113 = sphi 0, %s110
      %s114 = sphi 0, %s113
      %s130 = sphi 0, %s114
    $region4: #{tpu_custom_call.1} parent=1 // loop_header_branch
      %19 = sbr.rel (%p17) target = $region8
    $region5: #{tpu_custom_call.1} parent=1 // loop_body
      %s21 = ssub.s32 %s16, 1
      %s22 = ssub.s32 %s16, 2
      %s29 = sadd.s32 1, %s24
      %p30 = scmp.ge.s32.totalorder %s29, 1
      %s31 = scalar_select %p30, 0, %s29
      %s32 = sadd.s32 1, %s23
      %s33 = scalar_select %p30, %s32, %s23
      %p34 = scmp.ge.s32.totalorder %s33, 2
      %s35 = scalar_select %p34, 0, %s33
      %s36 = ssub.s32 %s23, %s35
      %s37 = ssub.s32 %s24, %s31
      %s38 = sor.u32 %s36, %s37
      %p39 = scmp.eq.s32.totalorder %s38, 0
      %s41 = sadd.s32 %s40, 1
      %s42 = scalar_select %p39, %s40, %s41
      %p45 = pneg %p39
      %p46 = scmp.eq.s32.totalorder %s16, 1
      %p47 = por %p45, %p46
      %p48 = scmp.ne.s32.totalorder %s40, %s43
      %p49 = scmp.eq.s32.totalorder %s16, 0
      %p50 = por %p48, %p49
      %p51 = scmp.ne.s32.totalorder %s40, %s43
      %p52 = scmp.eq.s32.totalorder %s21, 1
      %p53 = por %p51, %p52
      %p54 = scmp.ne.s32.totalorder %s43, %s44
      %p55 = scmp.eq.s32.totalorder %s21, 0
      %p56 = por %p54, %p55
      %p57 = scmp.ne.s32.totalorder %s43, %s44
      %p58 = scmp.eq.s32.totalorder %s22, 1
      %p59 = por %p57, %p58
      %p61 = scmp.ne.s32.totalorder %s44, %s60
      %p62 = scmp.eq.s32.totalorder %s22, 0
      %p63 = por %p61, %p62
      %s65 = sadd.s32 %s64, 1
      %p68 = scmp.eq.s32.totalorder %s16, 1
      %p69 = scmp.ne.s32.totalorder %s64, %s66
      %p70 = scmp.eq.s32.totalorder %s16, 0
      %p71 = por %p69, %p70
      %p72 = scmp.ne.s32.totalorder %s64, %s66
      %p73 = scmp.eq.s32.totalorder %s21, 1
      %p74 = por %p72, %p73
      %p75 = scmp.ne.s32.totalorder %s66, %s67
      %p76 = scmp.eq.s32.totalorder %s21, 0
      %p77 = por %p75, %p76
      %p78 = scmp.ne.s32.totalorder %s66, %s67
      %p79 = scmp.eq.s32.totalorder %s22, 1
      %p80 = por %p78, %p79
      %p82 = scmp.ne.s32.totalorder %s67, %s81
      %p83 = scmp.eq.s32.totalorder %s22, 0
      %p84 = por %p82, %p83
      %s86 = sadd.s32 %s85, 1
      %p89 = scmp.eq.s32.totalorder %s16, 1
      %p90 = scmp.ne.s32.totalorder %s85, %s87
      %p91 = scmp.eq.s32.totalorder %s16, 0
      %p92 = por %p90, %p91
      %p93 = scmp.ne.s32.totalorder %s85, %s87
      %p94 = scmp.eq.s32.totalorder %s21, 1
      %p95 = por %p93, %p94
      %p96 = scmp.ne.s32.totalorder %s87, %s88
      %p97 = scmp.eq.s32.totalorder %s21, 0
      %p98 = por %p96, %p97
      %p99 = scmp.ne.s32.totalorder %s87, %s88
      %p100 = scmp.eq.s32.totalorder %s22, 1
      %p101 = por %p99, %p100
      %p103 = scmp.ne.s32.totalorder %s88, %s102
      %p104 = scmp.eq.s32.totalorder %s22, 0
      %p105 = por %p103, %p104
      %s106 = ssub.s32 %s23, %s35
      %s107 = ssub.s32 %s24, %s31
      %s108 = sor.u32 %s106, %s107
      %p109 = scmp.eq.s32.totalorder %s108, 0
      %s111 = sadd.s32 %s110, 1
      %s112 = scalar_select %p109, %s110, %s111
      %p115 = pneg %p109
      %p116 = scmp.eq.s32.totalorder %s16, 1
      %p117 = por %p115, %p116
      %p118 = scmp.ne.s32.totalorder %s110, %s113
      %p119 = scmp.eq.s32.totalorder %s16, 0
      %p120 = por %p118, %p119
      %p121 = scmp.ne.s32.totalorder %s110, %s113
      %p122 = scmp.eq.s32.totalorder %s21, 1
      %p123 = por %p121, %p122
      %p124 = scmp.ne.s32.totalorder %s113, %s114
      %p125 = scmp.eq.s32.totalorder %s21, 0
      %p126 = por %p124, %p125
      %p127 = scmp.ne.s32.totalorder %s113, %s114
      %p128 = scmp.eq.s32.totalorder %s22, 1
      %p129 = por %p127, %p128
      %p131 = scmp.ne.s32.totalorder %s114, %s130
      %p132 = scmp.eq.s32.totalorder %s22, 0
      %p133 = por %p131, %p132
      %p134 = scmp.le.s32.totalorder 1, %s16
      %p135 = scmp.lt.s32.totalorder %s16, 3
      %p136 = pnand %p134, %p135
      %p137 = pneg %p136
      // Predicated region
      $region9: #{tpu_custom_call.1} parent=5 // pred_check
        _
      $region10: #{tpu_custom_call.1} parent=5 // pred_check_branch
        %139 = sbr.rel (%p136) target = $region12
      $region11: #{tpu_custom_call.1} parent=5 // pred_region
        %s140 = ssub.s32 %s16, 1
        // Predicated region
        $region13: #{tpu_custom_call.1} parent=11 // pred_check
          %p141 = pneg %p77
        $region14: #{tpu_custom_call.1} parent=11 // pred_check_branch
          %143 = sbr.rel (%p141) target = $region16
        $region15: #{tpu_custom_call.1} parent=11 // pred_region
          %s145 = ssub.s32 1024, 1024
          %146 = vsyncadd [#allocation6], %s145
          %s147 = sshll.u32 [#allocation5], 4
          %s148 = int_to_ptr.vmem [resolvable:$true] %s147
          %153 = dma.hbm_to_vmem [thread:$0]  %s1, 1024, %s148, [#allocation6], 64, 64, 4
        $region16: #{tpu_custom_call.1} parent=11 // pred_fallthru
          _
        // Predicated region
        $region17: #{tpu_custom_call.1} parent=11 // pred_check
          %p154 = pneg %p98
        $region18: #{tpu_custom_call.1} parent=11 // pred_check_branch
          %156 = sbr.rel (%p154) target = $region20
        $region19: #{tpu_custom_call.1} parent=11 // pred_region
          _
        $region20: #{tpu_custom_call.1} parent=11 // pred_fallthru
          _
      $region12: #{tpu_custom_call.1} parent=5 // pred_fallthru
        _
      %p157 = scmp.lt.s32.totalorder %s16, 2
      // Predicated region
      $region21: #{tpu_custom_call.1} parent=5 // pred_check
        %p158 = pneg %p157
      $region22: #{tpu_custom_call.1} parent=5 // pred_check_branch
        %160 = sbr.rel (%p158) target = $region24
      $region23: #{tpu_custom_call.1} parent=5 // pred_region
        // Predicated region
        $region25: #{tpu_custom_call.1} parent=23 // pred_check
          %p161 = pneg %p50
        $region26: #{tpu_custom_call.1} parent=23 // pred_check_branch
          %163 = sbr.rel (%p161) target = $region28
        $region27: #{tpu_custom_call.1} parent=23 // pred_region
          %s164 = sand.u32 %s40, 1
          %s165 = scalar_lea.sflag [#allocation3], %s164
          %s166 = sand.u32 %s40, 1
          %s167 = smul.addr %s166, 2
          %s168 = scalar_lea.vmem [#allocation2], %s167
          %s169 = smul.u32 2, %s24
          %s171 = ssub.s32 32, 32
          %172 = vsyncadd %s165, %s171
          %s173 = smul.addr %s23, 2
          %s174 = sadd.s32 %s169, %s173
          %s175 = smul.addr %s174, 16
          %s176 = scalar_lea.hbm %s0, %s175
          %s177 = sshll.u32 %s168, 4
          %s178 = int_to_ptr.vmem [resolvable:$true] %s177
          %183 = dma.hbm_to_vmem [thread:$0]  %s176, 32, %s178, %s165, 16, 16, 1
        $region28: #{tpu_custom_call.1} parent=23 // pred_fallthru
          _
      $region24: #{tpu_custom_call.1} parent=5 // pred_fallthru
        _
      %p184 = scmp.le.s32.totalorder 1, %s16
      %p185 = scmp.lt.s32.totalorder %s16, 3
      %p186 = pnand %p184, %p185
      %p187 = pneg %p186
      // Predicated region
      $region29: #{tpu_custom_call.1} parent=5 // pred_check
        _
      $region30: #{tpu_custom_call.1} parent=5 // pred_check_branch
        %189 = sbr.rel (%p186) target = $region32
      $region31: #{tpu_custom_call.1} parent=5 // pred_region
        %s190 = ssub.s32 %s16, 1
        %s191 = sand.u32 %s43, 1
        %s192 = scalar_lea.sflag [#allocation3], %s191
        %s193 = sand.u32 %s43, 1
        %s194 = smul.addr %s193, 2
        %s195 = scalar_lea.vmem [#allocation2], %s194
        // Predicated region
        $region33: #{tpu_custom_call.1} parent=31 // pred_check
          %p196 = pneg %p56
        $region34: #{tpu_custom_call.1} parent=31 // pred_check_branch
          %198 = sbr.rel (%p196) target = $region36
        $region35: #{tpu_custom_call.1} parent=31 // pred_region
          %199 = dma.done %s192, 32
        $region36: #{tpu_custom_call.1} parent=31 // pred_fallthru
          _
        // Predicated region
        $region37: #{tpu_custom_call.1} parent=31 // pred_check
          %p200 = pneg %p77
        $region38: #{tpu_custom_call.1} parent=31 // pred_check_branch
          %202 = sbr.rel (%p200) target = $region40
        $region39: #{tpu_custom_call.1} parent=31 // pred_region
          %203 = dma.done [#allocation6], 1024
        $region40: #{tpu_custom_call.1} parent=31 // pred_fallthru
          _
        %s204 = sand.u32 %s43, 1
        %s205 = scalar_lea.sflag [#allocation3], %s204
        %s206 = sand.u32 %s43, 1
        %s207 = smul.addr %s206, 2
        %s208 = scalar_lea.vmem [#allocation2], %s207
        %p209 = pneg %p56
        %p210 = pneg %p53
        %p211 = pneg %p77
        %p212 = pneg %p74
        %p213 = pneg %p98
        %p214 = pneg %p95
        %p215 = pneg %p126
        %p216 = pneg %p123
        %s217 = sand.u32 %s113, 1
        %s218 = scalar_lea.sflag [#allocation4], %s217
        %s219 = sand.u32 %s113, 1
        %s220 = smul.addr %s219, 2
        %s221 = scalar_lea.vmem [#allocation7], %s220
        %s222 = smul.u32 2, %s26
        %s223 = smul.u32 2, %s26
        %v225 = vld [vmem:[%s195] sm:$0x1]
        %v226 = vld [vmem:[%s195 + $0x1] sm:$0x1]
        %v227 = vld [vmem:[#allocation5] sm:$0xf]
        %v228 = vld [vmem:[#allocation5 + $0x4] sm:$0xf]
        %v229 = vld [vmem:[#allocation5 + $0x8] sm:$0xf]
        %v230 = vld [vmem:[#allocation5 + $0xc] sm:$0xf]
        %v231 = vld [vmem:[#allocation5 + $0x10] sm:$0xf]
        %v232 = vld [vmem:[#allocation5 + $0x14] sm:$0xf]
        %v233 = vld [vmem:[#allocation5 + $0x18] sm:$0xf]
        %v234 = vld [vmem:[#allocation5 + $0x1c] sm:$0xf]
        %v235 = vld [vmem:[#allocation5 + $0x20] sm:$0xf]
        %v236 = vld [vmem:[#allocation5 + $0x24] sm:$0xf]
        %v237 = vld [vmem:[#allocation5 + $0x28] sm:$0xf]
        %v238 = vld [vmem:[#allocation5 + $0x2c] sm:$0xf]
        %v239 = vld [vmem:[#allocation5 + $0x30] sm:$0xf]
        %v240 = vld [vmem:[#allocation5 + $0x34] sm:$0xf]
        %v241 = vld [vmem:[#allocation5 + $0x38] sm:$0xf]
        %v242 = vld [vmem:[#allocation5 + $0x3c] sm:$0xf]
        %v243 = vld [vmem:[%s2] sm:$0x1]
        %v245 = vlaneseq
        %v246 = vshrl.u32 %v245, 7
        %v247 = vsub.s32 0, %v246
        %v248 = vrot.slane %v243, %v247
        %v252 = vcombine.low %v225, %v226
        %v254 = vunpack.c.l.s4 1966171168
        %v255 = vunpack.c.0.s8 %v254
        %v256 = vlaneseq
        %v257 = vshrl.u32 %v256, 7
        %v258 = vsub.s32 %v255, %v257
        %v259 = vrot.slane %v252, %v258
        %v261 = vunpack.c.l.s4 1966171168
        %v262 = vunpack.c.0.s8 %v261
        %v263 = vlaneseq
        %v264 = vshrl.u32 %v263, 7
        %v265 = vsub.s32 %v262, %v264
        %v266 = vrot.slane %v259, %v265
        %v284 = vunpack.c.l.b16 %v227
        %v285 = vunpack.c.l.b16 %v228
        %v286 = vunpack.c.l.b16 %v229
        %v287 = vunpack.c.l.b16 %v230
        %v288 = vunpack.c.l.b16 %v231
        %v289 = vunpack.c.l.b16 %v232
        %v290 = vunpack.c.l.b16 %v233
        %v291 = vunpack.c.l.b16 %v234
        %v292 = vunpack.c.l.b16 %v235
        %v293 = vunpack.c.l.b16 %v236
        %v294 = vunpack.c.l.b16 %v237
        %v295 = vunpack.c.l.b16 %v238
        %v296 = vunpack.c.l.b16 %v239
        %v297 = vunpack.c.l.b16 %v240
        %v298 = vunpack.c.l.b16 %v241
        %v299 = vunpack.c.l.b16 %v242
        %v300 = vpack.c.b16 %v285, %v284
        %v301 = vpack.c.b16 %v287, %v286
        %v302 = vpack.c.b16 %v289, %v288
        %v303 = vpack.c.b16 %v291, %v290
        %v304 = vpack.c.b16 %v293, %v292
        %v305 = vpack.c.b16 %v295, %v294
        %v306 = vpack.c.b16 %v297, %v296
        %v307 = vpack.c.b16 %v299, %v298
        %316 = vmatprep.subr.bf16.mxu0 0
        %317 = vmatpush1.bf16.msra.mxu0 %v300
        %318 = vmatprep.subr.bf16.mxu0 0
        %319 = vmatpush1.bf16.msra.mxu0 %v301
        %320 = vmatprep.subr.bf16.mxu0 0
        %321 = vmatpush1.bf16.msra.mxu0 %v302
        %322 = vmatprep.subr.bf16.mxu0 0
        %323 = vmatpush1.bf16.msra.mxu0 %v303
        %324 = vmatprep.subr.bf16.mxu0 0
        %325 = vmatpush1.bf16.msra.mxu0 %v304
        %326 = vmatprep.subr.bf16.mxu0 0
        %327 = vmatpush1.bf16.msra.mxu0 %v305
        %328 = vmatprep.subr.bf16.mxu0 0
        %329 = vmatpush1.bf16.msra.mxu0 %v306
        %330 = vmatprep.subr.bf16.mxu0 0
        %331 = vmatpush1.bf16.msra.mxu0 %v307
        %332 = vmatprep.subr.bf16.mxu0 0
        %333 = vmatpush1.bf16.msra.mxu0 0
        %334 = vmatprep.subr.bf16.mxu0 0
        %335 = vmatpush1.bf16.msra.mxu0 0
        %336 = vmatprep.subr.bf16.mxu0 0
        %337 = vmatpush1.bf16.msra.mxu0 0
        %338 = vmatprep.subr.bf16.mxu0 0
        %339 = vmatpush1.bf16.msra.mxu0 0
        %340 = vmatprep.subr.bf16.mxu0 0
        %341 = vmatpush1.bf16.msra.mxu0 0
        %342 = vmatprep.subr.bf16.mxu0 0
        %343 = vmatpush1.bf16.msra.mxu0 0
        %344 = vmatprep.subr.bf16.mxu0 0
        %345 = vmatpush1.bf16.msra.mxu0 0
        %346 = vmatprep.subr.bf16.mxu0 0
        %347 = vmatpush1.bf16.msra.mxu0 0
        %348 = vmatprep.mubr.bf16.mxu0 0
        %349 = vmatmul.mubr.bf16.gmra.mrb[0].mxu0 %v266
        %v350 = vpop.f32.mrb[0].mxu0
        %v351 = vadd.f32 %v248, %v350
        %v352 = vpop.f32.mrb[0].mxu0
        %v353 = vpop.f32.mrb[0].mxu0
        %v354 = vpop.f32.mrb[0].mxu0
        %355 = vdwg.mxu0
        %v358 = vunpack.c.l.s4 1983009808
        %v359 = vunpack.c.0.s8 %v358
        %v360 = vlaneseq
        %v361 = vshrl.u32 %v360, 7
        %v362 = vsub.s32 %v359, %v361
        %v363 = vrot.slane %v351, %v362
        %v364 = vcombine.high %v363, %v363
        %v367 = vpack.c.bf16 %v363, %v363
        %v368 = vpack.c.bf16 %v364, %v364
        %369 = vst [vmem:[%s221] sm:$0x1] %v367
        %370 = vst [vmem:[%s221 + $0x1] sm:$0x1] %v368
        %s371 = sand.u32 %s113, 1
        %s372 = scalar_lea.sflag [#allocation4], %s371
        %s373 = sand.u32 %s113, 1
        %s374 = smul.addr %s373, 2
        %s375 = scalar_lea.vmem [#allocation7], %s374
        // Predicated region
        $region41: #{tpu_custom_call.1} parent=31 // pred_check
          %p376 = pneg %p123
        $region42: #{tpu_custom_call.1} parent=31 // pred_check_branch
          %378 = sbr.rel (%p376) target = $region44
        $region43: #{tpu_custom_call.1} parent=31 // pred_region
          %s379 = smul.u32 2, %s26
          %s381 = ssub.s32 32, 32
          %382 = vsyncadd %s372, %s381
          %s383 = smul.addr %s25, 2
          %s384 = sadd.s32 %s379, %s383
          %s385 = smul.addr %s384, 16
          %s386 = scalar_lea.hbm %s3, %s385
          %s387 = sshll.u32 %s375, 4
          %s388 = int_to_ptr.vmem [resolvable:$true] %s387
          %393 = dma.vmem_to_hbm [thread:$0]  %s388, 32, %s386, %s372, 16, 16, 1
        $region44: #{tpu_custom_call.1} parent=31 // pred_fallthru
          _
      $region32: #{tpu_custom_call.1} parent=5 // pred_fallthru
        _
      %p394 = scmp.le.s32.totalorder 2, %s16
      // Predicated region
      $region45: #{tpu_custom_call.1} parent=5 // pred_check
        %p395 = pneg %p394
      $region46: #{tpu_custom_call.1} parent=5 // pred_check_branch
        %397 = sbr.rel (%p395) target = $region48
      $region47: #{tpu_custom_call.1} parent=5 // pred_region
        %s398 = ssub.s32 %s16, 2
        // Predicated region
        $region49: #{tpu_custom_call.1} parent=47 // pred_check
          %p399 = pneg %p129
        $region50: #{tpu_custom_call.1} parent=47 // pred_check_branch
          %401 = sbr.rel (%p399) target = $region52
        $region51: #{tpu_custom_call.1} parent=47 // pred_region
          %s402 = sand.u32 %s114, 1
          %s403 = scalar_lea.sflag [#allocation4], %s402
          %s404 = sand.u32 %s114, 1
          %s405 = smul.addr %s404, 2
          %s406 = scalar_lea.vmem [#allocation7], %s405
          %407 = dma.done %s403, 32
        $region52: #{tpu_custom_call.1} parent=47 // pred_fallthru
          _
      $region48: #{tpu_custom_call.1} parent=5 // pred_fallthru
        _
    $region6: #{tpu_custom_call.1} parent=1 // loop_footer
      %s20 = sadd.s32 1, %s16
    $region7: #{tpu_custom_call.1} parent=1 // loop_footer_branch
      %15 = sbr.rel target = $region3
    $region8: #{tpu_custom_call.1} parent=1 // loop_exit
      _
    %408 = vsyncpa [#allocation3], 1
    %s409 = scalar_lea.sflag [#allocation3], 1
    %410 = vsyncpa %s409, 1
    %411 = vsyncpa [#allocation6], 1
    %412 = vsyncpa [#allocation4], 1
    %s413 = scalar_lea.sflag [#allocation4], 1
    %414 = vsyncpa %s413, 1

</llo_original>
